<compile_context>
chip_gen: v7x
topology: tpu7x:2x2x1
jax: 0.10.0
libtpu: 0.0.40
codegen_flags: <defaults>
</compile_context>

<pallas_src>
import jax
import jax.numpy as jnp
from jax.experimental import pallas as pl
from jax.experimental.pallas import tpu as pltpu

LANE = 128
ROW_CHUNK = 128          # rows per inner step (bounds vreg live ranges)


def _round_up(x, m):
    return ((x + m - 1) // m) * m


def _bn_silu(y, a, b):
    """Fused BatchNorm affine + SiLU on an f32 tile; a, b broadcast as (1, C)."""
    z = y * a + b
    # Clamp before exp so exp(-z) cannot overflow to inf (sigmoid saturates
    # long before |z| = 30).  reciprocal -> EUP (off the VALU slot).
    zc = jnp.clip(z, -30.0, 30.0)
    return z * pl.reciprocal(1.0 + jnp.exp(-zc), approx=True)


# --------------------------- dense (MXU) kernels ----------------------------
def _make_dense_pass1_kernel(store_y):
    """Per P-tile: bf16 MXU matmul in 128-row chunks, per-tile partial stats.

    If store_y, also writes the conv result as bf16 (re-used by pass 2);
    stats are always taken from the f32 MXU result before the cast."""

    def kernel(p_ref, w_ref, *out_refs):
        if store_y:
            y_ref, sum_ref, sumsq_ref = out_refs
        else:
            sum_ref, sumsq_ref = out_refs
        cp = sum_ref.shape[-1]
        tp = p_ref.shape[0]
        w = w_ref[...]                                   # hoisted weight load

        def chunk_body(c, carry):
            s, ss = carry
            r0 = pl.multiple_of(c * ROW_CHUNK, ROW_CHUNK)
            y = jnp.dot(p_ref[pl.ds(r0, ROW_CHUNK), :], w,
                        preferred_element_type=jnp.float32)
            if store_y:
                y_ref[pl.ds(r0, ROW_CHUNK), :] = y.astype(y_ref.dtype)
            yc = y.reshape(ROW_CHUNK // 8, 8, cp)        # (8,128)-aligned relabel
            return s + jnp.sum(yc, axis=0), ss + jnp.sum(yc * yc, axis=0)

        init = (jnp.zeros((8, cp), jnp.float32),
                jnp.zeros((8, cp), jnp.float32))
        s, ss = jax.lax.fori_loop(0, tp // ROW_CHUNK, chunk_body, init,
                                  unroll=True)
        sum_ref[0] = s
        sumsq_ref[0] = ss

    return kernel


def _dense_recompute_apply_kernel(p_ref, w_ref, a_ref, b_ref, o_ref):
    """Per P-tile: recompute the matmul and fuse BN affine + SiLU into the
    output store (no y intermediate in HBM)."""
    w = w_ref[...]
    a = a_ref[...]
    b = b_ref[...]
    tp = o_ref.shape[0]

    def chunk_body(c, carry):
        r0 = pl.multiple_of(c * ROW_CHUNK, ROW_CHUNK)
        y = jnp.dot(p_ref[pl.ds(r0, ROW_CHUNK), :], w,
                    preferred_element_type=jnp.float32)
        o_ref[pl.ds(r0, ROW_CHUNK), :] = _bn_silu(y, a, b).astype(o_ref.dtype)
        return carry

    jax.lax.fori_loop(0, tp // ROW_CHUNK, chunk_body, 0, unroll=True)


def _y_apply_kernel(y_ref, a_ref, b_ref, o_ref):
    """Per P-tile: BN affine + SiLU on a stored bf16 conv result."""
    y = y_ref[...].astype(jnp.float32)
    o_ref[...] = _bn_silu(y, a_ref[...], b_ref[...]).astype(o_ref.dtype)


# ------------------------- depthwise (VPU) kernels --------------------------
def _dw_pass1_kernel(taps_ref, w_ref, sum_ref, sumsq_ref):
    """Depthwise stats: shifted-MAC over the KH*KW taps, channels on lanes."""
    cp = sum_ref.shape[-1]
    tp = taps_ref.shape[1]
    ntaps = taps_ref.shape[0]

    def tap_body(t, acc):
        return acc + taps_ref[t].astype(jnp.float32) * w_ref[t]

    y = jax.lax.fori_loop(0, ntaps, tap_body,
                          jnp.zeros((tp, cp), jnp.float32), unroll=True)
    yc = y.reshape(tp // 8, 8, cp)
    sum_ref[0] = jnp.sum(yc, axis=0)
    sumsq_ref[0] = jnp.sum(yc * yc, axis=0)


def _dw_apply_kernel(taps_ref, w_ref, a_ref, b_ref, o_ref):
    """Depthwise epilogue: recompute shifted-MAC, fuse BN affine + SiLU."""
    cp = o_ref.shape[-1]
    tp = o_ref.shape[0]
    ntaps = taps_ref.shape[0]

    def tap_body(t, acc):
        return acc + taps_ref[t].astype(jnp.float32) * w_ref[t]

    y = jax.lax.fori_loop(0, ntaps, tap_body,
                          jnp.zeros((tp, cp), jnp.float32), unroll=True)
    o_ref[...] = _bn_silu(y, a_ref[...], b_ref[...]).astype(o_ref.dtype)


# --------------------------------- wrapper -----------------------------------
def _fold_bn(psum, psumsq, gamma_p, beta_p, n_valid, eps):
    """Per-tile partial stats -> per-channel scale/shift (training-mode BN)."""
    total = jnp.sum(psum, axis=(0, 1))                     # (Cp,)
    total_sq = jnp.sum(psumsq, axis=(0, 1))
    inv_n = 1.0 / float(n_valid)
    mean = total * inv_n
    # NOTE: E[y^2] - mean^2 in f32; adequate for conv activations, less robust
    # than a centered second pass for extreme magnitudes.
    var = jnp.maximum(total_sq * inv_n - mean * mean, 0.0)  # biased variance
    scale = gamma_p * jax.lax.rsqrt(var + eps)
    a = scale[None, :]
    b = (beta_p - mean * scale)[None, :]
    return a, b


def _im2col_taps(xp, N, OH, OW, stride, KH, KW, Cin):
    """List of KH*KW shifted slabs, each (P, Cin), tap-major order (kh, kw)."""
    P = N * OH * OW
    taps = []
    for kh in range(KH):
        for kw in range(KW):
            sl = xp[:, kh:kh + stride * (OH - 1) + 1:stride,
                       kw:kw + stride * (OW - 1) + 1:stride, :]
            taps.append(sl.reshape(P, Cin))
    return taps


def _dense_forward(xp, weight, gamma, beta, *, N, OH, OW, stride, KH, KW,
                   Cin, Cout, groups, eps, store_y):
    P = N * OH * OW
    T = KH * KW
    Cin_g = Cin // groups
    Cout_g = Cout // groups
    Kg = Cin_g * T
    K_total = Cin * T
    Kt = _round_up(K_total, 16)          # contraction dim (bf16 sublane pack)
    Cp = _round_up(Cout, LANE)           # lane-dense output channels

    # im2col in bf16, column order (cin, kh, kw) == group-major, matches OIHW.
    taps = _im2col_taps(xp, N, OH, OW, stride, KH, KW, Cin)
    patches = jnp.stack(taps, axis=-1).reshape(P, K_total)        # (P, Cin*T)

    if store_y is None:
        # Recompute the matmul in pass 2 unless re-reading patches costs more
        # HBM bytes than writing + re-reading a bf16 y  (2*Kt vs 4*Cp B/row).
        store_y = Kt >= 2 * Cp

    # VMEM-budgeted P tile (double-buffered pipeline blocks, worst pass).
    def vmem_need(tp):
        pass1 = 2 * tp * Kt * 2 + 2 * Kt * Cp * 2 + 2 * 2 * 8 * Cp * 4
        if store_y:
            pass1 += 2 * tp * Cp * 2
            pass2 = 2 * tp * Cp * 2 + 2 * 2 * Cp * 4 + 2 * tp * Cp * 4
        else:
            pass2 = (2 * tp * Kt * 2 + 2 * Kt * Cp * 2 + 2 * 2 * Cp * 4
                     + 2 * tp * Cp * 4)
        return max(pass1, pass2)

    TP = min(512, _round_up(P, ROW_CHUNK))
    while TP > ROW_CHUNK and vmem_need(TP) > 40 * 1024 * 1024:
        TP -= ROW_CHUNK
    n_tiles = -(-P // TP)
    P_pad = n_tiles * TP
    vmem_limit = int(min(60 * 2**20, max(24 * 2**20, 2 * vmem_need(TP))))

    patches = jnp.pad(patches, ((0, P_pad - P), (0, Kt - K_total)))
    patches = patches.astype(jnp.bfloat16)

    # Weight -> (Kt, Cp) bf16.  groups == 1 is a plain reshape; otherwise a
    # vectorized block-diagonal via einsum with the group identity.
    if groups == 1:
        w2 = weight.astype(jnp.float32).reshape(Cout, K_total).T    # (K, Cout)
    else:
        w_g = weight.astype(jnp.float32).reshape(groups, Cout_g, Kg)
        w_g = jnp.transpose(w_g, (0, 2, 1))                          # (G,Kg,Cout_g)
        eye = jnp.eye(groups, dtype=jnp.float32)
        w2 = jnp.einsum('gkc,gh->gkhc', w_g, eye).reshape(groups * Kg,
                                                          groups * Cout_g)
    w2 = jnp.pad(w2, ((0, Kt - K_total), (0, Cp - Cout))).astype(jnp.bfloat16)

    gamma_p = jnp.pad(gamma.astype(jnp.float32), (0, Cp - Cout))
    beta_p = jnp.pad(beta.astype(jnp.float32), (0, Cp - Cout))

    p_spec = pl.BlockSpec((TP, Kt), lambda i: (i, 0))
    w_spec = pl.BlockSpec((Kt, Cp), lambda i: (0, 0))
    stat_spec = pl.BlockSpec((1, 8, Cp), lambda i: (i, 0, 0))
    y_spec = pl.BlockSpec((TP, Cp), lambda i: (i, 0))
    row_spec = pl.BlockSpec((1, Cp), lambda i: (0, 0))
    out_spec = pl.BlockSpec((TP, Cp), lambda i: (i, 0))
    params = pltpu.CompilerParams(dimension_semantics=("parallel",),
                                  vmem_limit_bytes=vmem_limit)
    stat_shape = jax.ShapeDtypeStruct((n_tiles, 8, Cp), jnp.float32)

    # ---- pass 1: matmul + per-tile partial statistics (parallel grid) ----
    if store_y:
        out_shape1 = (jax.ShapeDtypeStruct((P_pad, Cp), jnp.bfloat16),
                      stat_shape, stat_shape)
        out_specs1 = (y_spec, stat_spec, stat_spec)
    else:
        out_shape1 = (stat_shape, stat_shape)
        out_specs1 = (stat_spec, stat_spec)

    res = pl.pallas_call(
        _make_dense_pass1_kernel(store_y),
        out_shape=out_shape1, grid=(n_tiles,),
        in_specs=[p_spec, w_spec], out_specs=out_specs1,
        compiler_params=params)(patches, w2)
    if store_y:
        y_bf16, psum, psumsq = res
    else:
        psum, psumsq = res

    a, b = _fold_bn(psum, psumsq, gamma_p, beta_p, P, eps)

    # ---- pass 2: (matmul +) BN affine + SiLU, parallel over P tiles ----
    if store_y:
        out_flat = pl.pallas_call(
            _y_apply_kernel,
            out_shape=jax.ShapeDtypeStruct((P_pad, Cp), jnp.float32),
            grid=(n_tiles,),
            in_specs=[y_spec, row_spec, row_spec], out_specs=out_spec,
            compiler_params=params)(y_bf16, a, b)
    else:
        out_flat = pl.pallas_call(
            _dense_recompute_apply_kernel,
            out_shape=jax.ShapeDtypeStruct((P_pad, Cp), jnp.float32),
            grid=(n_tiles,),
            in_specs=[p_spec, w_spec, row_spec, row_spec], out_specs=out_spec,
            compiler_params=params)(patches, w2, a, b)

    return out_flat[:P, :Cout]


def _depthwise_forward(xp, weight, gamma, beta, *, N, OH, OW, stride, KH, KW,
                       C, eps):
    P = N * OH * OW
    T = KH * KW
    Cp = _round_up(C, LANE)

    TP = 128                                  # rows per tile (pure VPU path)
    n_tiles = -(-P // TP)
    P_pad = n_tiles * TP

    taps = jnp.stack(_im2col_taps(xp, N, OH, OW, stride, KH, KW, C), axis=0)
    taps = jnp.pad(taps, ((0, 0), (0, P_pad - P), (0, Cp - C)))     # (T,Pp,Cp) bf16

    # Per-tap per-channel weights, channels on the lane axis (no block-diag).
    w_taps = weight.astype(jnp.float32).reshape(C, T).T             # (T, C)
    w_taps = jnp.pad(w_taps, ((0, 0), (0, Cp - C))).reshape(T, 1, Cp)

    gamma_p = jnp.pad(gamma.astype(jnp.float32), (0, Cp - C))
    beta_p = jnp.pad(beta.astype(jnp.float32), (0, Cp - C))

    taps_spec = pl.BlockSpec((T, TP, Cp), lambda i: (0, i, 0))
    wt_spec = pl.BlockSpec((T, 1, Cp), lambda i: (0, 0, 0))
    stat_spec = pl.BlockSpec((1, 8, Cp), lambda i: (i, 0, 0))
    row_spec = pl.BlockSpec((1, Cp), lambda i: (0, 0))
    out_spec = pl.BlockSpec((TP, Cp), lambda i: (i, 0))

    vmem_need = (2 * T * TP * Cp * 2 + 2 * T * Cp * 4 + 2 * TP * Cp * 4
                 + 2 * 2 * 8 * Cp * 4)
    params = pltpu.CompilerParams(
        dimension_semantics=("parallel",),
        vmem_limit_bytes=int(min(60 * 2**20, max(24 * 2**20, 2 * vmem_need))))
    stat_shape = jax.ShapeDtypeStruct((n_tiles, 8, Cp), jnp.float32)

    psum, psumsq = pl.pallas_call(
        _dw_pass1_kernel,
        out_shape=(stat_shape, stat_shape), grid=(n_tiles,),
        in_specs=[taps_spec, wt_spec], out_specs=(stat_spec, stat_spec),
        compiler_params=params)(taps, w_taps)

    a, b = _fold_bn(psum, psumsq, gamma_p, beta_p, P, eps)

    out_flat = pl.pallas_call(
        _dw_apply_kernel,
        out_shape=jax.ShapeDtypeStruct((P_pad, Cp), jnp.float32),
        grid=(n_tiles,),
        in_specs=[taps_spec, wt_spec, row_spec, row_spec], out_specs=out_spec,
        compiler_params=params)(taps, w_taps, a, b)

    return out_flat[:P, :C]


def cnn_block_forward(x_nchw, weight, gamma, beta, *, stride, padding, groups,
                      eps=1e-5, store_y=None):
    """CNNBlock forward: Conv2d(bias=False) + BatchNorm2d(train stats) + SiLU."""
    N, Cin, H, W = x_nchw.shape
    Cout, Cin_g, KH, KW = weight.shape
    assert Cin_g * groups == Cin and Cout % groups == 0
    OH = (H + 2 * padding - KH) // stride + 1
    OW = (W + 2 * padding - KW) // stride + 1

    # NCHW -> NHWC (channels on lanes) in bf16, spatially zero-padded.
    x = jnp.transpose(x_nchw, (0, 2, 3, 1)).astype(jnp.bfloat16)
    xp = jnp.pad(x, ((0, 0), (padding, padding), (padding, padding), (0, 0)))

    if groups == Cin and Cout == Cin and Cin_g == 1:      # depthwise (VPU path)
        out_flat = _depthwise_forward(xp, weight, gamma, beta, N=N, OH=OH,
                                      OW=OW, stride=stride, KH=KH, KW=KW,
                                      C=Cin, eps=eps)
    else:                                                  # dense / grouped MXU
        out_flat = _dense_forward(xp, weight, gamma, beta, N=N, OH=OH, OW=OW,
                                  stride=stride, KH=KH, KW=KW, Cin=Cin,
                                  Cout=Cout, groups=groups, eps=eps,
                                  store_y=store_y)

    out = out_flat.reshape(N, OH, OW, Cout)
    # TODO(synk): skip this extra HBM pass if the consumer accepts NHWC.
    return jnp.transpose(out, (0, 3, 1, 2))


def _reference(x, weight, gamma, beta, *, stride, padding, groups, eps=1e-5):
    """Pure-JAX reference matching PyTorch CNNBlock forward (training-mode BN)."""
    y = jax.lax.conv_general_dilated(
        x, weight, window_strides=(stride, stride),
        padding=[(padding, padding), (padding, padding)],
        dimension_numbers=("NCHW", "OIHW", "NCHW"),
        feature_group_count=groups)
    mean = jnp.mean(y, axis=(0, 2, 3), keepdims=True)
    var = jnp.mean((y - mean) ** 2, axis=(0, 2, 3), keepdims=True)
    z = (y - mean) * jax.lax.rsqrt(var + eps)
    z = z * gamma.reshape(1, -1, 1, 1) + beta.reshape(1, -1, 1, 1)
    return z * jax.nn.sigmoid(z)


if __name__ == "__main__":
    key = jax.random.PRNGKey(0)
    N, H, W = 2, 16, 16
    configs = [
        # (Cin, Cout, kernel, stride, padding, groups, store_y)
        (4, 8, 3, 1, 1, 1, None),    # standard 3x3 conv (recompute epilogue)
        (4, 4, 3, 2, 1, 4, None),    # depthwise 3x3 stride-2 (VPU tap-MAC path)
        (8, 8, 3, 1, 1, 2, True),    # grouped conv, forced stored-bf16-y path
        (4, 16, 1, 1, 0, 1, None),   # 1x1 expand conv
    ]
    for (Cin, Cout, KS, stride, padding, groups, store_y) in configs:
        k1, k2, k3, k4, key = jax.random.split(key, 5)
        x = jax.random.normal(k1, (N, Cin, H, W), jnp.float32)
        w = jax.random.normal(k2, (Cout, Cin // groups, KS, KS),
                              jnp.float32) * 0.1
        gamma = 1.0 + 0.1 * jax.random.normal(k3, (Cout,), jnp.float32)
        beta = 0.1 * jax.random.normal(k4, (Cout,), jnp.float32)

        out = cnn_block_forward(x, w, gamma, beta, stride=stride,
                                padding=padding, groups=groups,
                                store_y=store_y)
        out = jax.block_until_ready(out)

        ref = _reference(x, w, gamma, beta, stride=stride, padding=padding,
                         groups=groups)
        assert out.shape == ref.shape, (out.shape, ref.shape)
        max_err = float(jnp.max(jnp.abs(out - ref)))
        # bf16 MXU/VPU inputs -> looser tolerance than a pure-f32 pipeline.
        assert jnp.allclose(out, ref, rtol=3e-2, atol=3e-2), max_err

    print("KERNEL_OK")
</pallas_src>

<mosaic_0001>
module attributes {stable_mosaic.version = 11 : i64} {
  func.func @kernel(%arg0: i32, %arg1: memref<512x48xbf16, #tpu.memory_space<vmem>>, %arg2: memref<48x128xbf16, #tpu.memory_space<vmem>>, %arg3: memref<1x8x128xf32, #tpu.memory_space<vmem>>, %arg4: memref<1x8x128xf32, #tpu.memory_space<vmem>>) attributes {dimension_semantics = [#tpu.dimension_semantics<parallel>], iteration_bounds = array<i64: 1>, scalar_prefetch = 0 : i64, scratch_operands = 0 : i64, tpu.core_type = #tpu.core_type<tc>, window_params = [{transform_indices = @transform_0, window_bounds = array<i64: 512, 48>}, {pipeline_mode = #tpu.pipeline_mode<synchronous>, transform_indices = @transform_1, window_bounds = array<i64: 48, 128>}, {transform_indices = @transform_2, window_bounds = array<i64: 1, 8, 128>}, {transform_indices = @transform_3, window_bounds = array<i64: 1, 8, 128>}]} {
    %c0 = arith.constant 0 : index
    %c0_0 = arith.constant 0 : index
    %0 = vector.load %arg2[%c0, %c0_0] : memref<48x128xbf16, #tpu.memory_space<vmem>>, vector<48x128xbf16>
    %cst = arith.constant 0.000000e+00 : f32
    %1 = vector.broadcast %cst : f32 to vector<8x128xf32>
    %cst_1 = arith.constant 0.000000e+00 : f32
    %2 = vector.broadcast %cst_1 : f32 to vector<8x128xf32>
    %c0_i32 = arith.constant 0 : i32
    %c128_i32 = arith.constant 128 : i32
    %3 = arith.muli %c0_i32, %c128_i32 : i32
    %4 = tpu.assume_multiple %3, 128 : i32
    %5 = arith.index_cast %4 : i32 to index
    %c0_2 = arith.constant 0 : index
    %6 = vector.load %arg1[%5, %c0_2] : memref<512x48xbf16, #tpu.memory_space<vmem>>, vector<128x48xbf16>
    %cst_3 = arith.constant dense<0.000000e+00> : vector<128x128xf32>
    %7 = tpu.matmul %6, %0, %cst_3 {dimension_numbers = #tpu.dot_dimension_numbers<[1], [0], [0], [1], [0, 0, 1, 1], [], []>} : vector<128x48xbf16>, vector<48x128xbf16>, vector<128x128xf32> -> vector<128x128xf32>
    %8 = vector.shape_cast %7 : vector<128x128xf32> to vector<16x8x128xf32>
    %cst_4 = arith.constant dense<0.000000e+00> : vector<8x128xf32>
    %9 = vector.multi_reduction <add>, %8, %cst_4 [0] : vector<16x8x128xf32> to vector<8x128xf32>
    %10 = arith.addf %1, %9 : vector<8x128xf32>
    %11 = arith.mulf %8, %8 : vector<16x8x128xf32>
    %cst_5 = arith.constant dense<0.000000e+00> : vector<8x128xf32>
    %12 = vector.multi_reduction <add>, %11, %cst_5 [0] : vector<16x8x128xf32> to vector<8x128xf32>
    %13 = arith.addf %2, %12 : vector<8x128xf32>
    %c1_i32 = arith.constant 1 : i32
    %c128_i32_6 = arith.constant 128 : i32
    %14 = arith.muli %c1_i32, %c128_i32_6 : i32
    %15 = tpu.assume_multiple %14, 128 : i32
    %16 = arith.index_cast %15 : i32 to index
    %c0_7 = arith.constant 0 : index
    %17 = vector.load %arg1[%16, %c0_7] : memref<512x48xbf16, #tpu.memory_space<vmem>>, vector<128x48xbf16>
    %cst_8 = arith.constant dense<0.000000e+00> : vector<128x128xf32>
    %18 = tpu.matmul %17, %0, %cst_8 {dimension_numbers = #tpu.dot_dimension_numbers<[1], [0], [0], [1], [0, 0, 1, 1], [], []>} : vector<128x48xbf16>, vector<48x128xbf16>, vector<128x128xf32> -> vector<128x128xf32>
    %19 = vector.shape_cast %18 : vector<128x128xf32> to vector<16x8x128xf32>
    %cst_9 = arith.constant dense<0.000000e+00> : vector<8x128xf32>
    %20 = vector.multi_reduction <add>, %19, %cst_9 [0] : vector<16x8x128xf32> to vector<8x128xf32>
    %21 = arith.addf %10, %20 : vector<8x128xf32>
    %22 = arith.mulf %19, %19 : vector<16x8x128xf32>
    %cst_10 = arith.constant dense<0.000000e+00> : vector<8x128xf32>
    %23 = vector.multi_reduction <add>, %22, %cst_10 [0] : vector<16x8x128xf32> to vector<8x128xf32>
    %24 = arith.addf %13, %23 : vector<8x128xf32>
    %c2_i32 = arith.constant 2 : i32
    %c128_i32_11 = arith.constant 128 : i32
    %25 = arith.muli %c2_i32, %c128_i32_11 : i32
    %26 = tpu.assume_multiple %25, 128 : i32
    %27 = arith.index_cast %26 : i32 to index
    %c0_12 = arith.constant 0 : index
    %28 = vector.load %arg1[%27, %c0_12] : memref<512x48xbf16, #tpu.memory_space<vmem>>, vector<128x48xbf16>
    %cst_13 = arith.constant dense<0.000000e+00> : vector<128x128xf32>
    %29 = tpu.matmul %28, %0, %cst_13 {dimension_numbers = #tpu.dot_dimension_numbers<[1], [0], [0], [1], [0, 0, 1, 1], [], []>} : vector<128x48xbf16>, vector<48x128xbf16>, vector<128x128xf32> -> vector<128x128xf32>
    %30 = vector.shape_cast %29 : vector<128x128xf32> to vector<16x8x128xf32>
    %cst_14 = arith.constant dense<0.000000e+00> : vector<8x128xf32>
    %31 = vector.multi_reduction <add>, %30, %cst_14 [0] : vector<16x8x128xf32> to vector<8x128xf32>
    %32 = arith.addf %21, %31 : vector<8x128xf32>
    %33 = arith.mulf %30, %30 : vector<16x8x128xf32>
    %cst_15 = arith.constant dense<0.000000e+00> : vector<8x128xf32>
    %34 = vector.multi_reduction <add>, %33, %cst_15 [0] : vector<16x8x128xf32> to vector<8x128xf32>
    %35 = arith.addf %24, %34 : vector<8x128xf32>
    %c3_i32 = arith.constant 3 : i32
    %c128_i32_16 = arith.constant 128 : i32
    %36 = arith.muli %c3_i32, %c128_i32_16 : i32
    %37 = tpu.assume_multiple %36, 128 : i32
    %38 = arith.index_cast %37 : i32 to index
    %c0_17 = arith.constant 0 : index
    %39 = vector.load %arg1[%38, %c0_17] : memref<512x48xbf16, #tpu.memory_space<vmem>>, vector<128x48xbf16>
    %cst_18 = arith.constant dense<0.000000e+00> : vector<128x128xf32>
    %40 = tpu.matmul %39, %0, %cst_18 {dimension_numbers = #tpu.dot_dimension_numbers<[1], [0], [0], [1], [0, 0, 1, 1], [], []>} : vector<128x48xbf16>, vector<48x128xbf16>, vector<128x128xf32> -> vector<128x128xf32>
    %41 = vector.shape_cast %40 : vector<128x128xf32> to vector<16x8x128xf32>
    %cst_19 = arith.constant dense<0.000000e+00> : vector<8x128xf32>
    %42 = vector.multi_reduction <add>, %41, %cst_19 [0] : vector<16x8x128xf32> to vector<8x128xf32>
    %43 = arith.addf %32, %42 : vector<8x128xf32>
    %44 = arith.mulf %41, %41 : vector<16x8x128xf32>
    %cst_20 = arith.constant dense<0.000000e+00> : vector<8x128xf32>
    %45 = vector.multi_reduction <add>, %44, %cst_20 [0] : vector<16x8x128xf32> to vector<8x128xf32>
    %46 = arith.addf %35, %45 : vector<8x128xf32>
    %c4_i32 = arith.constant 4 : i32
    %c0_21 = arith.constant 0 : index
    %c0_22 = arith.constant 0 : index
    %c0_23 = arith.constant 0 : index
    %47 = vector.load %arg3[%c0_21, %c0_22, %c0_23] : memref<1x8x128xf32, #tpu.memory_space<vmem>>, vector<1x8x128xf32>
    %48 = vector.shape_cast %47 : vector<1x8x128xf32> to vector<8x128xf32>
    %49 = vector.shape_cast %43 : vector<8x128xf32> to vector<1x8x128xf32>
    tpu.vector_store %arg3[%c0_21, %c0_22, %c0_23], %49 {strides = array<i32>} : memref<1x8x128xf32, #tpu.memory_space<vmem>>, vector<1x8x128xf32>,
    %c0_24 = arith.constant 0 : index
    %c0_25 = arith.constant 0 : index
    %c0_26 = arith.constant 0 : index
    %50 = vector.load %arg4[%c0_24, %c0_25, %c0_26] : memref<1x8x128xf32, #tpu.memory_space<vmem>>, vector<1x8x128xf32>
    %51 = vector.shape_cast %50 : vector<1x8x128xf32> to vector<8x128xf32>
    %52 = vector.shape_cast %46 : vector<8x128xf32> to vector<1x8x128xf32>
    tpu.vector_store %arg4[%c0_24, %c0_25, %c0_26], %52 {strides = array<i32>} : memref<1x8x128xf32, #tpu.memory_space<vmem>>, vector<1x8x128xf32>,
    return
  }
  func.func @transform_0(%arg0: i32) -> (i32, i32) {
    %c0_i32 = arith.constant 0 : i32
    %c0_i32_0 = arith.constant 0 : i32
    return %arg0, %c0_i32 : i32, i32
  }
  func.func @transform_1(%arg0: i32) -> (i32, i32) {
    %c0_i32 = arith.constant 0 : i32
    %c0_i32_0 = arith.constant 0 : i32
    %c0_i32_1 = arith.constant 0 : i32
    return %c0_i32, %c0_i32_0 : i32, i32
  }
  func.func @transform_2(%arg0: i32) -> (i32, i32, i32) {
    %c0_i32 = arith.constant 0 : i32
    %c0_i32_0 = arith.constant 0 : i32
    %c0_i32_1 = arith.constant 0 : i32
    return %arg0, %c0_i32, %c0_i32_0 : i32, i32, i32
  }
  func.func @transform_3(%arg0: i32) -> (i32, i32, i32) {
    %c0_i32 = arith.constant 0 : i32
    %c0_i32_0 = arith.constant 0 : i32
    %c0_i32_1 = arith.constant 0 : i32
    return %arg0, %c0_i32, %c0_i32_0 : i32, i32, i32
  }
}

</mosaic_0001>

<llo_original>
// kernel: tpu_custom_call.1
$region0: #{tpu_custom_call.1}
  #allocation0 [shape = 'u32[]', space=smem, size = 0x4, offset = 0x4, fixed_abs, tag = 'smem constant byte address 0x4 - core index']
  #allocation1 [shape = 'u32[144,128]{1,0:T(1,128)}', space=vmem, size = 0x12000, scoped, tag = 'internal scratch']
  %s0 = inlined_call_operand.vmem [shape: bf16[512,48], index: 0, kind: input, shape index: {}]
  %s1 = inlined_call_operand.vmem [shape: bf16[48,128], index: 1, kind: input, shape index: {}]
  %s2 = inlined_call_operand.hbm [shape: f32[1,8,128], index: 2, kind: output, shape index: {0}]
  %s3 = inlined_call_operand.hbm [shape: f32[1,8,128], index: 3, kind: output, shape index: {1}]
  %4 = xla_tuple %s2, %s3
  %s5 = sld [smem:[#allocation0]]
  $region26: #{tpu_custom_call.1} parent=0
    _
  %s7 = ssub.s32 1, %s5
  %s8 = scalar_select 0, %s7, %s5
  $region1: #{tpu_custom_call.1} parent=0
    #allocation2 [shape = 'u8[4096]{0}', space=vmem, size = 0x1000, scoped, tag = 'output window, operand 0, single buffered']
    #allocation3 [shape = 's32[1]{0}', space=sflag, size = 0x4, scoped, tag = 'scoped memory for tpu_custom_call.1']
    #allocation4 [shape = 'u8[4096]{0}', space=vmem, size = 0x1000, scoped, tag = 'output window, operand 1, single buffered']
    #allocation5 [shape = 's32[1]{0}', space=sflag, size = 0x4, scoped, tag = 'scoped memory for tpu_custom_call.1']
    %9 = vsyncpa [#allocation3], 0
    %10 = vsyncpa [#allocation5], 0
    // Predicated region
    $region2: #{tpu_custom_call.1} parent=1 // pred_check
      _
    $region3: #{tpu_custom_call.1} parent=1 // pred_check_branch
      %12 = sbr.rel (0) target = $region5
    $region4: #{tpu_custom_call.1} parent=1 // pred_region
      _
    $region5: #{tpu_custom_call.1} parent=1 // pred_fallthru
      _
    // Predicated region
    $region6: #{tpu_custom_call.1} parent=1 // pred_check
      _
    $region7: #{tpu_custom_call.1} parent=1 // pred_check_branch
      %14 = sbr.rel (0) target = $region9
    $region8: #{tpu_custom_call.1} parent=1 // pred_region
      _
    $region9: #{tpu_custom_call.1} parent=1 // pred_fallthru
      _
    %v16 = vld [vmem:[%s1] sm:$0xf]
    %v17 = vld [vmem:[%s1 + $0x4] sm:$0xf]
    %v18 = vld [vmem:[%s1 + $0x8] sm:$0xf]
    %v19 = vld [vmem:[%s1 + $0xc] sm:$0xf]
    %v20 = vld [vmem:[%s1 + $0x10] sm:$0xf]
    %v21 = vld [vmem:[%s1 + $0x14] sm:$0xf]
    %v22 = vld [vmem:[%s0] sm:$0xf]
    %v23 = vld [vmem:[%s0 + $0x4] sm:$0xf]
    %v24 = vld [vmem:[%s0 + $0x8] sm:$0xf]
    %v25 = vld [vmem:[%s0 + $0xc] sm:$0xf]
    %v26 = vld [vmem:[%s0 + $0x10] sm:$0xf]
    %v27 = vld [vmem:[%s0 + $0x14] sm:$0xf]
    %v28 = vld [vmem:[%s0 + $0x18] sm:$0xf]
    %v29 = vld [vmem:[%s0 + $0x1c] sm:$0xf]
    %v30 = vld [vmem:[%s0 + $0x20] sm:$0xf]
    %v31 = vld [vmem:[%s0 + $0x24] sm:$0xf]
    %v32 = vld [vmem:[%s0 + $0x28] sm:$0xf]
    %v33 = vld [vmem:[%s0 + $0x2c] sm:$0xf]
    %v34 = vld [vmem:[%s0 + $0x30] sm:$0xf]
    %v35 = vld [vmem:[%s0 + $0x34] sm:$0xf]
    %v36 = vld [vmem:[%s0 + $0x38] sm:$0xf]
    %v37 = vld [vmem:[%s0 + $0x3c] sm:$0xf]
    %v54 = vunpack.c.l.b16 %v22
    %v55 = vunpack.c.l.b16 %v23
    %v56 = vunpack.c.l.b16 %v24
    %v57 = vunpack.c.l.b16 %v25
    %v58 = vunpack.c.l.b16 %v26
    %v59 = vunpack.c.l.b16 %v27
    %v60 = vunpack.c.l.b16 %v28
    %v61 = vunpack.c.l.b16 %v29
    %v62 = vunpack.c.l.b16 %v30
    %v63 = vunpack.c.l.b16 %v31
    %v64 = vunpack.c.l.b16 %v32
    %v65 = vunpack.c.l.b16 %v33
    %v66 = vunpack.c.l.b16 %v34
    %v67 = vunpack.c.l.b16 %v35
    %v68 = vunpack.c.l.b16 %v36
    %v69 = vunpack.c.l.b16 %v37
    %v70 = vpack.c.b16 %v55, %v54
    %v71 = vpack.c.b16 %v57, %v56
    %v72 = vpack.c.b16 %v59, %v58
    %v73 = vpack.c.b16 %v61, %v60
    %v74 = vpack.c.b16 %v63, %v62
    %v75 = vpack.c.b16 %v65, %v64
    %v76 = vpack.c.b16 %v67, %v66
    %v77 = vpack.c.b16 %v69, %v68
    %v84 = vunpack.c.l.b16 %v16
    %v85 = vunpack.c.l.b16 %v17
    %v86 = vunpack.c.l.b16 %v18
    %v87 = vunpack.c.l.b16 %v19
    %v88 = vunpack.c.l.b16 %v20
    %v89 = vunpack.c.l.b16 %v21
    %v90 = vpack.c.b16 %v85, %v84
    %v91 = vpack.c.b16 %v87, %v86
    %v92 = vpack.c.b16 %v89, %v88
    %vm96 = vcmask 392192
    %v98 = vsel %vm96, %v70, 0
    %v101 = vsel %vm96, %v71, 0
    %v104 = vsel %vm96, %v72, 0
    %v107 = vsel %vm96, %v73, 0
    %v110 = vsel %vm96, %v74, 0
    %v113 = vsel %vm96, %v75, 0
    %v116 = vsel %vm96, %v76, 0
    %v119 = vsel %vm96, %v77, 0
    %121 = vmatprep.subr.bf16.mxu0 0
    %122 = vmatpush1.bf16.msra.mxu0 %v90
    %123 = vmatprep.subr.bf16.mxu0 0
    %124 = vmatpush1.bf16.msra.mxu0 %v91
    %125 = vmatprep.subr.bf16.mxu0 0
    %126 = vmatpush1.bf16.msra.mxu0 %v92
    %127 = vmatprep.subr.bf16.mxu0 0
    %128 = vmatpush1.bf16.msra.mxu0 0
    %129 = vmatprep.subr.bf16.mxu0 0
    %130 = vmatpush1.bf16.msra.mxu0 0
    %131 = vmatprep.subr.bf16.mxu0 0
    %132 = vmatpush1.bf16.msra.mxu0 0
    %133 = vmatprep.subr.bf16.mxu0 0
    %134 = vmatpush1.bf16.msra.mxu0 0
    %135 = vmatprep.subr.bf16.mxu0 0
    %136 = vmatpush1.bf16.msra.mxu0 0
    %137 = vmatprep.subr.bf16.mxu0 0
    %138 = vmatpush1.bf16.msra.mxu0 0
    %139 = vmatprep.subr.bf16.mxu0 0
    %140 = vmatpush1.bf16.msra.mxu0 0
    %141 = vmatprep.subr.bf16.mxu0 0
    %142 = vmatpush1.bf16.msra.mxu0 0
    %143 = vmatprep.subr.bf16.mxu0 0
    %144 = vmatpush1.bf16.msra.mxu0 0
    %145 = vmatprep.subr.bf16.mxu0 0
    %146 = vmatpush1.bf16.msra.mxu0 0
    %147 = vmatprep.subr.bf16.mxu0 0
    %148 = vmatpush1.bf16.msra.mxu0 0
    %149 = vmatprep.subr.bf16.mxu0 0
    %150 = vmatpush1.bf16.msra.mxu0 0
    %151 = vmatprep.subr.bf16.mxu0 0
    %152 = vmatpush1.bf16.msra.mxu0 0
    %153 = vmatprep.mubr.bf16.mxu0 0
    %154 = vmatmul.mubr.bf16.gmra.mrb[0].mxu0 %v98
    %v155 = vpop.f32.mrb[0].mxu0
    %v156 = vadd.f32 0.0, %v155
    %v157 = vpop.f32.mrb[0].mxu0
    %v158 = vpop.f32.mrb[0].mxu0
    %v159 = vadd.f32 0.0, %v158
    %v160 = vpop.f32.mrb[0].mxu0
    %161 = vmatprep.mubr.bf16.mxu0 0
    %162 = vmatmul.mubr.bf16.gmra.mrb[0].mxu0 %v101
    %v163 = vpop.f32.mrb[0].mxu0
    %v164 = vadd.f32 0.0, %v163
    %v165 = vpop.f32.mrb[0].mxu0
    %v166 = vpop.f32.mrb[0].mxu0
    %v167 = vadd.f32 0.0, %v166
    %v168 = vpop.f32.mrb[0].mxu0
    %169 = vmatprep.mubr.bf16.mxu0 0
    %170 = vmatmul.mubr.bf16.gmra.mrb[0].mxu0 %v104
    %v171 = vpop.f32.mrb[0].mxu0
    %v172 = vadd.f32 0.0, %v171
    %v173 = vpop.f32.mrb[0].mxu0
    %v174 = vpop.f32.mrb[0].mxu0
    %v175 = vadd.f32 0.0, %v174
    %v176 = vpop.f32.mrb[0].mxu0
    %177 = vmatprep.mubr.bf16.mxu0 0
    %178 = vmatmul.mubr.bf16.gmra.mrb[0].mxu0 %v107
    %v179 = vpop.f32.mrb[0].mxu0
    %v180 = vadd.f32 0.0, %v179
    %v181 = vpop.f32.mrb[0].mxu0
    %v182 = vpop.f32.mrb[0].mxu0
    %v183 = vadd.f32 0.0, %v182
    %v184 = vpop.f32.mrb[0].mxu0
    %185 = vmatprep.mubr.bf16.mxu0 0
    %186 = vmatmul.mubr.bf16.gmra.mrb[0].mxu0 %v110
    %v187 = vpop.f32.mrb[0].mxu0
    %v188 = vadd.f32 0.0, %v187
    %v189 = vpop.f32.mrb[0].mxu0
    %v190 = vpop.f32.mrb[0].mxu0
    %v191 = vadd.f32 0.0, %v190
    %v192 = vpop.f32.mrb[0].mxu0
    %193 = vmatprep.mubr.bf16.mxu0 0
    %194 = vmatmul.mubr.bf16.gmra.mrb[0].mxu0 %v113
    %v195 = vpop.f32.mrb[0].mxu0
    %v196 = vadd.f32 0.0, %v195
    %v197 = vpop.f32.mrb[0].mxu0
    %v198 = vpop.f32.mrb[0].mxu0
    %v199 = vadd.f32 0.0, %v198
    %v200 = vpop.f32.mrb[0].mxu0
    %201 = vmatprep.mubr.bf16.mxu0 0
    %202 = vmatmul.mubr.bf16.gmra.mrb[0].mxu0 %v116
    %v203 = vpop.f32.mrb[0].mxu0
    %v204 = vadd.f32 0.0, %v203
    %v205 = vpop.f32.mrb[0].mxu0
    %v206 = vpop.f32.mrb[0].mxu0
    %v207 = vadd.f32 0.0, %v206
    %v208 = vpop.f32.mrb[0].mxu0
    %209 = vmatprep.mubr.bf16.mxu0 0
    %210 = vmatmul.mubr.bf16.gmra.mrb[0].mxu0 %v119
    %v211 = vpop.f32.mrb[0].mxu0
    %v212 = vadd.f32 0.0, %v211
    %v213 = vpop.f32.mrb[0].mxu0
    %v214 = vpop.f32.mrb[0].mxu0
    %v215 = vadd.f32 0.0, %v214
    %v216 = vpop.f32.mrb[0].mxu0
    %217 = vdwg.mxu0
    %v218 = vadd.f32 %v156, %v159
    %v219 = vadd.f32 %v218, %v164
    %v220 = vadd.f32 %v219, %v167
    %v221 = vadd.f32 %v220, %v172
    %v222 = vadd.f32 %v221, %v175
    %v223 = vadd.f32 %v222, %v180
    %v224 = vadd.f32 %v223, %v183
    %v225 = vadd.f32 %v224, %v188
    %v226 = vadd.f32 %v225, %v191
    %v227 = vadd.f32 %v226, %v196
    %v228 = vadd.f32 %v227, %v199
    %v229 = vadd.f32 %v228, %v204
    %v230 = vadd.f32 %v229, %v207
    %v231 = vadd.f32 %v230, %v212
    %v232 = vadd.f32 %v231, %v215
    %v233 = vadd.f32 %v232, 0.0
    %v234 = vmul.f32 %v156, %v156
    %v235 = vmul.f32 %v159, %v159
    %v236 = vmul.f32 %v164, %v164
    %v237 = vmul.f32 %v167, %v167
    %v238 = vmul.f32 %v172, %v172
    %v239 = vmul.f32 %v175, %v175
    %v240 = vmul.f32 %v180, %v180
    %v241 = vmul.f32 %v183, %v183
    %v242 = vmul.f32 %v188, %v188
    %v243 = vmul.f32 %v191, %v191
    %v244 = vmul.f32 %v196, %v196
    %v245 = vmul.f32 %v199, %v199
    %v246 = vmul.f32 %v204, %v204
    %v247 = vmul.f32 %v207, %v207
    %v248 = vmul.f32 %v212, %v212
    %v249 = vmul.f32 %v215, %v215
    %v250 = vadd.f32 %v234, %v235
    %v251 = vadd.f32 %v250, %v236
    %v252 = vadd.f32 %v251, %v237
    %v253 = vadd.f32 %v252, %v238
    %v254 = vadd.f32 %v253, %v239
    %v255 = vadd.f32 %v254, %v240
    %v256 = vadd.f32 %v255, %v241
    %v257 = vadd.f32 %v256, %v242
    %v258 = vadd.f32 %v257, %v243
    %v259 = vadd.f32 %v258, %v244
    %v260 = vadd.f32 %v259, %v245
    %v261 = vadd.f32 %v260, %v246
    %v262 = vadd.f32 %v261, %v247
    %v263 = vadd.f32 %v262, %v248
    %v264 = vadd.f32 %v263, %v249
    %v265 = vadd.f32 %v264, 0.0
    %s266 = scalar_lea.vmem %s0, 64
    %v267 = vld [vmem:[%s266] sm:$0xf]
    %v268 = vld [vmem:[%s266 + $0x4] sm:$0xf]
    %v269 = vld [vmem:[%s266 + $0x8] sm:$0xf]
    %v270 = vld [vmem:[%s266 + $0xc] sm:$0xf]
    %v271 = vld [vmem:[%s266 + $0x10] sm:$0xf]
    %v272 = vld [vmem:[%s266 + $0x14] sm:$0xf]
    %v273 = vld [vmem:[%s266 + $0x18] sm:$0xf]
    %v274 = vld [vmem:[%s266 + $0x1c] sm:$0xf]
    %v275 = vld [vmem:[%s266 + $0x20] sm:$0xf]
    %v276 = vld [vmem:[%s266 + $0x24] sm:$0xf]
    %v277 = vld [vmem:[%s266 + $0x28] sm:$0xf]
    %v278 = vld [vmem:[%s266 + $0x2c] sm:$0xf]
    %v279 = vld [vmem:[%s266 + $0x30] sm:$0xf]
    %v280 = vld [vmem:[%s266 + $0x34] sm:$0xf]
    %v281 = vld [vmem:[%s266 + $0x38] sm:$0xf]
    %v282 = vld [vmem:[%s266 + $0x3c] sm:$0xf]
    %v299 = vunpack.c.l.b16 %v267
    %v300 = vunpack.c.l.b16 %v268
    %v301 = vunpack.c.l.b16 %v269
    %v302 = vunpack.c.l.b16 %v270
    %v303 = vunpack.c.l.b16 %v271
    %v304 = vunpack.c.l.b16 %v272
    %v305 = vunpack.c.l.b16 %v273
    %v306 = vunpack.c.l.b16 %v274
    %v307 = vunpack.c.l.b16 %v275
    %v308 = vunpack.c.l.b16 %v276
    %v309 = vunpack.c.l.b16 %v277
    %v310 = vunpack.c.l.b16 %v278
    %v311 = vunpack.c.l.b16 %v279
    %v312 = vunpack.c.l.b16 %v280
    %v313 = vunpack.c.l.b16 %v281
    %v314 = vunpack.c.l.b16 %v282
    %v315 = vpack.c.b16 %v300, %v299
    %v316 = vpack.c.b16 %v302, %v301
    %v317 = vpack.c.b16 %v304, %v303
    %v318 = vpack.c.b16 %v306, %v305
    %v319 = vpack.c.b16 %v308, %v307
    %v320 = vpack.c.b16 %v310, %v309
    %v321 = vpack.c.b16 %v312, %v311
    %v322 = vpack.c.b16 %v314, %v313
    %v324 = vsel %vm96, %v315, 0
    %v327 = vsel %vm96, %v316, 0
    %v330 = vsel %vm96, %v317, 0
    %v333 = vsel %vm96, %v318, 0
    %v336 = vsel %vm96, %v319, 0
    %v339 = vsel %vm96, %v320, 0
    %v342 = vsel %vm96, %v321, 0
    %v345 = vsel %vm96, %v322, 0
    %347 = vmatprep.subr.bf16.mxu0 0
    %348 = vmatpush1.bf16.msra.mxu0 %v90
    %349 = vmatprep.subr.bf16.mxu0 0
    %350 = vmatpush1.bf16.msra.mxu0 %v91
    %351 = vmatprep.subr.bf16.mxu0 0
    %352 = vmatpush1.bf16.msra.mxu0 %v92
    %353 = vmatprep.subr.bf16.mxu0 0
    %354 = vmatpush1.bf16.msra.mxu0 0
    %355 = vmatprep.subr.bf16.mxu0 0
    %356 = vmatpush1.bf16.msra.mxu0 0
    %357 = vmatprep.subr.bf16.mxu0 0
    %358 = vmatpush1.bf16.msra.mxu0 0
    %359 = vmatprep.subr.bf16.mxu0 0
    %360 = vmatpush1.bf16.msra.mxu0 0
    %361 = vmatprep.subr.bf16.mxu0 0
    %362 = vmatpush1.bf16.msra.mxu0 0
    %363 = vmatprep.subr.bf16.mxu0 0
    %364 = vmatpush1.bf16.msra.mxu0 0
    %365 = vmatprep.subr.bf16.mxu0 0
    %366 = vmatpush1.bf16.msra.mxu0 0
    %367 = vmatprep.subr.bf16.mxu0 0
    %368 = vmatpush1.bf16.msra.mxu0 0
    %369 = vmatprep.subr.bf16.mxu0 0
    %370 = vmatpush1.bf16.msra.mxu0 0
    %371 = vmatprep.subr.bf16.mxu0 0
    %372 = vmatpush1.bf16.msra.mxu0 0
    %373 = vmatprep.subr.bf16.mxu0 0
    %374 = vmatpush1.bf16.msra.mxu0 0
    %375 = vmatprep.subr.bf16.mxu0 0
    %376 = vmatpush1.bf16.msra.mxu0 0
    %377 = vmatprep.subr.bf16.mxu0 0
    %378 = vmatpush1.bf16.msra.mxu0 0
    %379 = vmatprep.mubr.bf16.mxu0 0
    %380 = vmatmul.mubr.bf16.gmra.mrb[0].mxu0 %v324
    %v381 = vpop.f32.mrb[0].mxu0
    %v382 = vadd.f32 0.0, %v381
    %v383 = vpop.f32.mrb[0].mxu0
    %v384 = vpop.f32.mrb[0].mxu0
    %v385 = vadd.f32 0.0, %v384
    %v386 = vpop.f32.mrb[0].mxu0
    %387 = vmatprep.mubr.bf16.mxu0 0
    %388 = vmatmul.mubr.bf16.gmra.mrb[0].mxu0 %v327
    %v389 = vpop.f32.mrb[0].mxu0
    %v390 = vadd.f32 0.0, %v389
    %v391 = vpop.f32.mrb[0].mxu0
    %v392 = vpop.f32.mrb[0].mxu0
    %v393 = vadd.f32 0.0, %v392
    %v394 = vpop.f32.mrb[0].mxu0
    %395 = vmatprep.mubr.bf16.mxu0 0
    %396 = vmatmul.mubr.bf16.gmra.mrb[0].mxu0 %v330
    %v397 = vpop.f32.mrb[0].mxu0
    %v398 = vadd.f32 0.0, %v397
    %v399 = vpop.f32.mrb[0].mxu0
    %v400 = vpop.f32.mrb[0].mxu0
    %v401 = vadd.f32 0.0, %v400
    %v402 = vpop.f32.mrb[0].mxu0
    %403 = vmatprep.mubr.bf16.mxu0 0
    %404 = vmatmul.mubr.bf16.gmra.mrb[0].mxu0 %v333
    %v405 = vpop.f32.mrb[0].mxu0
    %v406 = vadd.f32 0.0, %v405
    %v407 = vpop.f32.mrb[0].mxu0
    %v408 = vpop.f32.mrb[0].mxu0
    %v409 = vadd.f32 0.0, %v408
    %v410 = vpop.f32.mrb[0].mxu0
    %411 = vmatprep.mubr.bf16.mxu0 0
    %412 = vmatmul.mubr.bf16.gmra.mrb[0].mxu0 %v336
    %v413 = vpop.f32.mrb[0].mxu0
    %v414 = vadd.f32 0.0, %v413
    %v415 = vpop.f32.mrb[0].mxu0
    %v416 = vpop.f32.mrb[0].mxu0
    %v417 = vadd.f32 0.0, %v416
    %v418 = vpop.f32.mrb[0].mxu0
    %419 = vmatprep.mubr.bf16.mxu0 0
    %420 = vmatmul.mubr.bf16.gmra.mrb[0].mxu0 %v339
    %v421 = vpop.f32.mrb[0].mxu0
    %v422 = vadd.f32 0.0, %v421
    %v423 = vpop.f32.mrb[0].mxu0
    %v424 = vpop.f32.mrb[0].mxu0
    %v425 = vadd.f32 0.0, %v424
    %v426 = vpop.f32.mrb[0].mxu0
    %427 = vmatprep.mubr.bf16.mxu0 0
    %428 = vmatmul.mubr.bf16.gmra.mrb[0].mxu0 %v342
    %v429 = vpop.f32.mrb[0].mxu0
    %v430 = vadd.f32 0.0, %v429
    %v431 = vpop.f32.mrb[0].mxu0
    %v432 = vpop.f32.mrb[0].mxu0
    %v433 = vadd.f32 0.0, %v432
    %v434 = vpop.f32.mrb[0].mxu0
    %435 = vmatprep.mubr.bf16.mxu0 0
    %436 = vmatmul.mubr.bf16.gmra.mrb[0].mxu0 %v345
    %v437 = vpop.f32.mrb[0].mxu0
    %v438 = vadd.f32 0.0, %v437
    %v439 = vpop.f32.mrb[0].mxu0
    %v440 = vpop.f32.mrb[0].mxu0
    %v441 = vadd.f32 0.0, %v440
    %v442 = vpop.f32.mrb[0].mxu0
    %443 = vdwg.mxu0
    %v444 = vadd.f32 %v382, %v385
    %v445 = vadd.f32 %v444, %v390
    %v446 = vadd.f32 %v445, %v393
    %v447 = vadd.f32 %v446, %v398
    %v448 = vadd.f32 %v447, %v401
    %v449 = vadd.f32 %v448, %v406
    %v450 = vadd.f32 %v449, %v409
    %v451 = vadd.f32 %v450, %v414
    %v452 = vadd.f32 %v451, %v417
    %v453 = vadd.f32 %v452, %v422
    %v454 = vadd.f32 %v453, %v425
    %v455 = vadd.f32 %v454, %v430
    %v456 = vadd.f32 %v455, %v433
    %v457 = vadd.f32 %v456, %v438
    %v458 = vadd.f32 %v457, %v441
    %v459 = vadd.f32 %v233, %v458
    %v460 = vmul.f32 %v382, %v382
    %v461 = vmul.f32 %v385, %v385
    %v462 = vmul.f32 %v390, %v390
    %v463 = vmul.f32 %v393, %v393
    %v464 = vmul.f32 %v398, %v398
    %v465 = vmul.f32 %v401, %v401
    %v466 = vmul.f32 %v406, %v406
    %v467 = vmul.f32 %v409, %v409
    %v468 = vmul.f32 %v414, %v414
    %v469 = vmul.f32 %v417, %v417
    %v470 = vmul.f32 %v422, %v422
    %v471 = vmul.f32 %v425, %v425
    %v472 = vmul.f32 %v430, %v430
    %v473 = vmul.f32 %v433, %v433
    %v474 = vmul.f32 %v438, %v438
    %v475 = vmul.f32 %v441, %v441
    %v476 = vadd.f32 %v460, %v461
    %v477 = vadd.f32 %v476, %v462
    %v478 = vadd.f32 %v477, %v463
    %v479 = vadd.f32 %v478, %v464
    %v480 = vadd.f32 %v479, %v465
    %v481 = vadd.f32 %v480, %v466
    %v482 = vadd.f32 %v481, %v467
    %v483 = vadd.f32 %v482, %v468
    %v484 = vadd.f32 %v483, %v469
    %v485 = vadd.f32 %v484, %v470
    %v486 = vadd.f32 %v485, %v471
    %v487 = vadd.f32 %v486, %v472
    %v488 = vadd.f32 %v487, %v473
    %v489 = vadd.f32 %v488, %v474
    %v490 = vadd.f32 %v489, %v475
    %v491 = vadd.f32 %v265, %v490
    %s492 = scalar_lea.vmem %s0, 128
    %v493 = vld [vmem:[%s492] sm:$0xf]
    %v494 = vld [vmem:[%s492 + $0x4] sm:$0xf]
    %v495 = vld [vmem:[%s492 + $0x8] sm:$0xf]
    %v496 = vld [vmem:[%s492 + $0xc] sm:$0xf]
    %v497 = vld [vmem:[%s492 + $0x10] sm:$0xf]
    %v498 = vld [vmem:[%s492 + $0x14] sm:$0xf]
    %v499 = vld [vmem:[%s492 + $0x18] sm:$0xf]
    %v500 = vld [vmem:[%s492 + $0x1c] sm:$0xf]
    %v501 = vld [vmem:[%s492 + $0x20] sm:$0xf]
    %v502 = vld [vmem:[%s492 + $0x24] sm:$0xf]
    %v503 = vld [vmem:[%s492 + $0x28] sm:$0xf]
    %v504 = vld [vmem:[%s492 + $0x2c] sm:$0xf]
    %v505 = vld [vmem:[%s492 + $0x30] sm:$0xf]
    %v506 = vld [vmem:[%s492 + $0x34] sm:$0xf]
    %v507 = vld [vmem:[%s492 + $0x38] sm:$0xf]
    %v508 = vld [vmem:[%s492 + $0x3c] sm:$0xf]
    %v525 = vunpack.c.l.b16 %v493
    %v526 = vunpack.c.l.b16 %v494
    %v527 = vunpack.c.l.b16 %v495
    %v528 = vunpack.c.l.b16 %v496
    %v529 = vunpack.c.l.b16 %v497
    %v530 = vunpack.c.l.b16 %v498
    %v531 = vunpack.c.l.b16 %v499
    %v532 = vunpack.c.l.b16 %v500
    %v533 = vunpack.c.l.b16 %v501
    %v534 = vunpack.c.l.b16 %v502
    %v535 = vunpack.c.l.b16 %v503
    %v536 = vunpack.c.l.b16 %v504
    %v537 = vunpack.c.l.b16 %v505
    %v538 = vunpack.c.l.b16 %v506
    %v539 = vunpack.c.l.b16 %v507
    %v540 = vunpack.c.l.b16 %v508
    %v541 = vpack.c.b16 %v526, %v525
    %v542 = vpack.c.b16 %v528, %v527
    %v543 = vpack.c.b16 %v530, %v529
    %v544 = vpack.c.b16 %v532, %v531
    %v545 = vpack.c.b16 %v534, %v533
    %v546 = vpack.c.b16 %v536, %v535
    %v547 = vpack.c.b16 %v538, %v537
    %v548 = vpack.c.b16 %v540, %v539
    %v550 = vsel %vm96, %v541, 0
    %v553 = vsel %vm96, %v542, 0
    %v556 = vsel %vm96, %v543, 0
    %v559 = vsel %vm96, %v544, 0
    %v562 = vsel %vm96, %v545, 0
    %v565 = vsel %vm96, %v546, 0
    %v568 = vsel %vm96, %v547, 0
    %v571 = vsel %vm96, %v548, 0
    %573 = vmatprep.subr.bf16.mxu0 0
    %574 = vmatpush1.bf16.msra.mxu0 %v90
    %575 = vmatprep.subr.bf16.mxu0 0
    %576 = vmatpush1.bf16.msra.mxu0 %v91
    %577 = vmatprep.subr.bf16.mxu0 0
    %578 = vmatpush1.bf16.msra.mxu0 %v92
    %579 = vmatprep.subr.bf16.mxu0 0
    %580 = vmatpush1.bf16.msra.mxu0 0
    %581 = vmatprep.subr.bf16.mxu0 0
    %582 = vmatpush1.bf16.msra.mxu0 0
    %583 = vmatprep.subr.bf16.mxu0 0
    %584 = vmatpush1.bf16.msra.mxu0 0
    %585 = vmatprep.subr.bf16.mxu0 0
    %586 = vmatpush1.bf16.msra.mxu0 0
    %587 = vmatprep.subr.bf16.mxu0 0
    %588 = vmatpush1.bf16.msra.mxu0 0
    %589 = vmatprep.subr.bf16.mxu0 0
    %590 = vmatpush1.bf16.msra.mxu0 0
    %591 = vmatprep.subr.bf16.mxu0 0
    %592 = vmatpush1.bf16.msra.mxu0 0
    %593 = vmatprep.subr.bf16.mxu0 0
    %594 = vmatpush1.bf16.msra.mxu0 0
    %595 = vmatprep.subr.bf16.mxu0 0
    %596 = vmatpush1.bf16.msra.mxu0 0
    %597 = vmatprep.subr.bf16.mxu0 0
    %598 = vmatpush1.bf16.msra.mxu0 0
    %599 = vmatprep.subr.bf16.mxu0 0
    %600 = vmatpush1.bf16.msra.mxu0 0
    %601 = vmatprep.subr.bf16.mxu0 0
    %602 = vmatpush1.bf16.msra.mxu0 0
    %603 = vmatprep.subr.bf16.mxu0 0
    %604 = vmatpush1.bf16.msra.mxu0 0
    %605 = vmatprep.mubr.bf16.mxu0 0
    %606 = vmatmul.mubr.bf16.gmra.mrb[0].mxu0 %v550
    %v607 = vpop.f32.mrb[0].mxu0
    %v608 = vadd.f32 0.0, %v607
    %v609 = vpop.f32.mrb[0].mxu0
    %v610 = vpop.f32.mrb[0].mxu0
    %v611 = vadd.f32 0.0, %v610
    %v612 = vpop.f32.mrb[0].mxu0
    %613 = vmatprep.mubr.bf16.mxu0 0
    %614 = vmatmul.mubr.bf16.gmra.mrb[0].mxu0 %v553
    %v615 = vpop.f32.mrb[0].mxu0
    %v616 = vadd.f32 0.0, %v615
    %v617 = vpop.f32.mrb[0].mxu0
    %v618 = vpop.f32.mrb[0].mxu0
    %v619 = vadd.f32 0.0, %v618
    %v620 = vpop.f32.mrb[0].mxu0
    %621 = vmatprep.mubr.bf16.mxu0 0
    %622 = vmatmul.mubr.bf16.gmra.mrb[0].mxu0 %v556
    %v623 = vpop.f32.mrb[0].mxu0
    %v624 = vadd.f32 0.0, %v623
    %v625 = vpop.f32.mrb[0].mxu0
    %v626 = vpop.f32.mrb[0].mxu0
    %v627 = vadd.f32 0.0, %v626
    %v628 = vpop.f32.mrb[0].mxu0
    %629 = vmatprep.mubr.bf16.mxu0 0
    %630 = vmatmul.mubr.bf16.gmra.mrb[0].mxu0 %v559
    %v631 = vpop.f32.mrb[0].mxu0
    %v632 = vadd.f32 0.0, %v631
    %v633 = vpop.f32.mrb[0].mxu0
    %v634 = vpop.f32.mrb[0].mxu0
    %v635 = vadd.f32 0.0, %v634
    %v636 = vpop.f32.mrb[0].mxu0
    %637 = vmatprep.mubr.bf16.mxu0 0
    %638 = vmatmul.mubr.bf16.gmra.mrb[0].mxu0 %v562
    %v639 = vpop.f32.mrb[0].mxu0
    %v640 = vadd.f32 0.0, %v639
    %v641 = vpop.f32.mrb[0].mxu0
    %v642 = vpop.f32.mrb[0].mxu0
    %v643 = vadd.f32 0.0, %v642
    %v644 = vpop.f32.mrb[0].mxu0
    %645 = vmatprep.mubr.bf16.mxu0 0
    %646 = vmatmul.mubr.bf16.gmra.mrb[0].mxu0 %v565
    %v647 = vpop.f32.mrb[0].mxu0
    %v648 = vadd.f32 0.0, %v647
    %v649 = vpop.f32.mrb[0].mxu0
    %v650 = vpop.f32.mrb[0].mxu0
    %v651 = vadd.f32 0.0, %v650
    %v652 = vpop.f32.mrb[0].mxu0
    %653 = vmatprep.mubr.bf16.mxu0 0
    %654 = vmatmul.mubr.bf16.gmra.mrb[0].mxu0 %v568
    %v655 = vpop.f32.mrb[0].mxu0
    %v656 = vadd.f32 0.0, %v655
    %v657 = vpop.f32.mrb[0].mxu0
    %v658 = vpop.f32.mrb[0].mxu0
    %v659 = vadd.f32 0.0, %v658
    %v660 = vpop.f32.mrb[0].mxu0
    %661 = vmatprep.mubr.bf16.mxu0 0
    %662 = vmatmul.mubr.bf16.gmra.mrb[0].mxu0 %v571
    %v663 = vpop.f32.mrb[0].mxu0
    %v664 = vadd.f32 0.0, %v663
    %v665 = vpop.f32.mrb[0].mxu0
    %v666 = vpop.f32.mrb[0].mxu0
    %v667 = vadd.f32 0.0, %v666
    %v668 = vpop.f32.mrb[0].mxu0
    %669 = vdwg.mxu0
    %v670 = vadd.f32 %v608, %v611
    %v671 = vadd.f32 %v670, %v616
    %v672 = vadd.f32 %v671, %v619
    %v673 = vadd.f32 %v672, %v624
    %v674 = vadd.f32 %v673, %v627
    %v675 = vadd.f32 %v674, %v632
    %v676 = vadd.f32 %v675, %v635
    %v677 = vadd.f32 %v676, %v640
    %v678 = vadd.f32 %v677, %v643
    %v679 = vadd.f32 %v678, %v648
    %v680 = vadd.f32 %v679, %v651
    %v681 = vadd.f32 %v680, %v656
    %v682 = vadd.f32 %v681, %v659
    %v683 = vadd.f32 %v682, %v664
    %v684 = vadd.f32 %v683, %v667
    %v685 = vadd.f32 %v459, %v684
    %v686 = vmul.f32 %v608, %v608
    %v687 = vmul.f32 %v611, %v611
    %v688 = vmul.f32 %v616, %v616
    %v689 = vmul.f32 %v619, %v619
    %v690 = vmul.f32 %v624, %v624
    %v691 = vmul.f32 %v627, %v627
    %v692 = vmul.f32 %v632, %v632
    %v693 = vmul.f32 %v635, %v635
    %v694 = vmul.f32 %v640, %v640
    %v695 = vmul.f32 %v643, %v643
    %v696 = vmul.f32 %v648, %v648
    %v697 = vmul.f32 %v651, %v651
    %v698 = vmul.f32 %v656, %v656
    %v699 = vmul.f32 %v659, %v659
    %v700 = vmul.f32 %v664, %v664
    %v701 = vmul.f32 %v667, %v667
    %v702 = vadd.f32 %v686, %v687
    %v703 = vadd.f32 %v702, %v688
    %v704 = vadd.f32 %v703, %v689
    %v705 = vadd.f32 %v704, %v690
    %v706 = vadd.f32 %v705, %v691
    %v707 = vadd.f32 %v706, %v692
    %v708 = vadd.f32 %v707, %v693
    %v709 = vadd.f32 %v708, %v694
    %v710 = vadd.f32 %v709, %v695
    %v711 = vadd.f32 %v710, %v696
    %v712 = vadd.f32 %v711, %v697
    %v713 = vadd.f32 %v712, %v698
    %v714 = vadd.f32 %v713, %v699
    %v715 = vadd.f32 %v714, %v700
    %v716 = vadd.f32 %v715, %v701
    %v717 = vadd.f32 %v491, %v716
    %s718 = scalar_lea.vmem %s0, 192
    %v719 = vld [vmem:[%s718] sm:$0xf]
    %v720 = vld [vmem:[%s718 + $0x4] sm:$0xf]
    %v721 = vld [vmem:[%s718 + $0x8] sm:$0xf]
    %v722 = vld [vmem:[%s718 + $0xc] sm:$0xf]
    %v723 = vld [vmem:[%s718 + $0x10] sm:$0xf]
    %v724 = vld [vmem:[%s718 + $0x14] sm:$0xf]
    %v725 = vld [vmem:[%s718 + $0x18] sm:$0xf]
    %v726 = vld [vmem:[%s718 + $0x1c] sm:$0xf]
    %v727 = vld [vmem:[%s718 + $0x20] sm:$0xf]
    %v728 = vld [vmem:[%s718 + $0x24] sm:$0xf]
    %v729 = vld [vmem:[%s718 + $0x28] sm:$0xf]
    %v730 = vld [vmem:[%s718 + $0x2c] sm:$0xf]
    %v731 = vld [vmem:[%s718 + $0x30] sm:$0xf]
    %v732 = vld [vmem:[%s718 + $0x34] sm:$0xf]
    %v733 = vld [vmem:[%s718 + $0x38] sm:$0xf]
    %v734 = vld [vmem:[%s718 + $0x3c] sm:$0xf]
    %v751 = vunpack.c.l.b16 %v719
    %v752 = vunpack.c.l.b16 %v720
    %v753 = vunpack.c.l.b16 %v721
    %v754 = vunpack.c.l.b16 %v722
    %v755 = vunpack.c.l.b16 %v723
    %v756 = vunpack.c.l.b16 %v724
    %v757 = vunpack.c.l.b16 %v725
    %v758 = vunpack.c.l.b16 %v726
    %v759 = vunpack.c.l.b16 %v727
    %v760 = vunpack.c.l.b16 %v728
    %v761 = vunpack.c.l.b16 %v729
    %v762 = vunpack.c.l.b16 %v730
    %v763 = vunpack.c.l.b16 %v731
    %v764 = vunpack.c.l.b16 %v732
    %v765 = vunpack.c.l.b16 %v733
    %v766 = vunpack.c.l.b16 %v734
    %v767 = vpack.c.b16 %v752, %v751
    %v768 = vpack.c.b16 %v754, %v753
    %v769 = vpack.c.b16 %v756, %v755
    %v770 = vpack.c.b16 %v758, %v757
    %v771 = vpack.c.b16 %v760, %v759
    %v772 = vpack.c.b16 %v762, %v761
    %v773 = vpack.c.b16 %v764, %v763
    %v774 = vpack.c.b16 %v766, %v765
    %v776 = vsel %vm96, %v767, 0
    %v779 = vsel %vm96, %v768, 0
    %v782 = vsel %vm96, %v769, 0
    %v785 = vsel %vm96, %v770, 0
    %v788 = vsel %vm96, %v771, 0
    %v791 = vsel %vm96, %v772, 0
    %v794 = vsel %vm96, %v773, 0
    %v797 = vsel %vm96, %v774, 0
    %799 = vmatprep.subr.bf16.mxu0 0
    %800 = vmatpush1.bf16.msra.mxu0 %v90
    %801 = vmatprep.subr.bf16.mxu0 0
    %802 = vmatpush1.bf16.msra.mxu0 %v91
    %803 = vmatprep.subr.bf16.mxu0 0
    %804 = vmatpush1.bf16.msra.mxu0 %v92
    %805 = vmatprep.subr.bf16.mxu0 0
    %806 = vmatpush1.bf16.msra.mxu0 0
    %807 = vmatprep.subr.bf16.mxu0 0
    %808 = vmatpush1.bf16.msra.mxu0 0
    %809 = vmatprep.subr.bf16.mxu0 0
    %810 = vmatpush1.bf16.msra.mxu0 0
    %811 = vmatprep.subr.bf16.mxu0 0
    %812 = vmatpush1.bf16.msra.mxu0 0
    %813 = vmatprep.subr.bf16.mxu0 0
    %814 = vmatpush1.bf16.msra.mxu0 0
    %815 = vmatprep.subr.bf16.mxu0 0
    %816 = vmatpush1.bf16.msra.mxu0 0
    %817 = vmatprep.subr.bf16.mxu0 0
    %818 = vmatpush1.bf16.msra.mxu0 0
    %819 = vmatprep.subr.bf16.mxu0 0
    %820 = vmatpush1.bf16.msra.mxu0 0
    %821 = vmatprep.subr.bf16.mxu0 0
    %822 = vmatpush1.bf16.msra.mxu0 0
    %823 = vmatprep.subr.bf16.mxu0 0
    %824 = vmatpush1.bf16.msra.mxu0 0
    %825 = vmatprep.subr.bf16.mxu0 0
    %826 = vmatpush1.bf16.msra.mxu0 0
    %827 = vmatprep.subr.bf16.mxu0 0
    %828 = vmatpush1.bf16.msra.mxu0 0
    %829 = vmatprep.subr.bf16.mxu0 0
    %830 = vmatpush1.bf16.msra.mxu0 0
    %831 = vmatprep.mubr.bf16.mxu0 0
    %832 = vmatmul.mubr.bf16.gmra.mrb[0].mxu0 %v776
    %v833 = vpop.f32.mrb[0].mxu0
    %v834 = vadd.f32 0.0, %v833
    %v835 = vpop.f32.mrb[0].mxu0
    %v836 = vpop.f32.mrb[0].mxu0
    %v837 = vadd.f32 0.0, %v836
    %v838 = vpop.f32.mrb[0].mxu0
    %839 = vmatprep.mubr.bf16.mxu0 0
    %840 = vmatmul.mubr.bf16.gmra.mrb[0].mxu0 %v779
    %v841 = vpop.f32.mrb[0].mxu0
    %v842 = vadd.f32 0.0, %v841
    %v843 = vpop.f32.mrb[0].mxu0
    %v844 = vpop.f32.mrb[0].mxu0
    %v845 = vadd.f32 0.0, %v844
    %v846 = vpop.f32.mrb[0].mxu0
    %847 = vmatprep.mubr.bf16.mxu0 0
    %848 = vmatmul.mubr.bf16.gmra.mrb[0].mxu0 %v782
    %v849 = vpop.f32.mrb[0].mxu0
    %v850 = vadd.f32 0.0, %v849
    %v851 = vpop.f32.mrb[0].mxu0
    %v852 = vpop.f32.mrb[0].mxu0
    %v853 = vadd.f32 0.0, %v852
    %v854 = vpop.f32.mrb[0].mxu0
    %855 = vmatprep.mubr.bf16.mxu0 0
    %856 = vmatmul.mubr.bf16.gmra.mrb[0].mxu0 %v785
    %v857 = vpop.f32.mrb[0].mxu0
    %v858 = vadd.f32 0.0, %v857
    %v859 = vpop.f32.mrb[0].mxu0
    %v860 = vpop.f32.mrb[0].mxu0
    %v861 = vadd.f32 0.0, %v860
    %v862 = vpop.f32.mrb[0].mxu0
    %863 = vmatprep.mubr.bf16.mxu0 0
    %864 = vmatmul.mubr.bf16.gmra.mrb[0].mxu0 %v788
    %v865 = vpop.f32.mrb[0].mxu0
    %v866 = vadd.f32 0.0, %v865
    %v867 = vpop.f32.mrb[0].mxu0
    %v868 = vpop.f32.mrb[0].mxu0
    %v869 = vadd.f32 0.0, %v868
    %v870 = vpop.f32.mrb[0].mxu0
    %871 = vmatprep.mubr.bf16.mxu0 0
    %872 = vmatmul.mubr.bf16.gmra.mrb[0].mxu0 %v791
    %v873 = vpop.f32.mrb[0].mxu0
    %v874 = vadd.f32 0.0, %v873
    %v875 = vpop.f32.mrb[0].mxu0
    %v876 = vpop.f32.mrb[0].mxu0
    %v877 = vadd.f32 0.0, %v876
    %v878 = vpop.f32.mrb[0].mxu0
    %879 = vmatprep.mubr.bf16.mxu0 0
    %880 = vmatmul.mubr.bf16.gmra.mrb[0].mxu0 %v794
    %v881 = vpop.f32.mrb[0].mxu0
    %v882 = vadd.f32 0.0, %v881
    %v883 = vpop.f32.mrb[0].mxu0
    %v884 = vpop.f32.mrb[0].mxu0
    %v885 = vadd.f32 0.0, %v884
    %v886 = vpop.f32.mrb[0].mxu0
    %887 = vmatprep.mubr.bf16.mxu0 0
    %888 = vmatmul.mubr.bf16.gmra.mrb[0].mxu0 %v797
    %v889 = vpop.f32.mrb[0].mxu0
    %v890 = vadd.f32 0.0, %v889
    %v891 = vpop.f32.mrb[0].mxu0
    %v892 = vpop.f32.mrb[0].mxu0
    %v893 = vadd.f32 0.0, %v892
    %v894 = vpop.f32.mrb[0].mxu0
    %895 = vdwg.mxu0
    %v896 = vadd.f32 %v834, %v837
    %v897 = vadd.f32 %v896, %v842
    %v898 = vadd.f32 %v897, %v845
    %v899 = vadd.f32 %v898, %v850
    %v900 = vadd.f32 %v899, %v853
    %v901 = vadd.f32 %v900, %v858
    %v902 = vadd.f32 %v901, %v861
    %v903 = vadd.f32 %v902, %v866
    %v904 = vadd.f32 %v903, %v869
    %v905 = vadd.f32 %v904, %v874
    %v906 = vadd.f32 %v905, %v877
    %v907 = vadd.f32 %v906, %v882
    %v908 = vadd.f32 %v907, %v885
    %v909 = vadd.f32 %v908, %v890
    %v910 = vadd.f32 %v909, %v893
    %v911 = vadd.f32 %v685, %v910
    %v912 = vmul.f32 %v834, %v834
    %v913 = vmul.f32 %v837, %v837
    %v914 = vmul.f32 %v842, %v842
    %v915 = vmul.f32 %v845, %v845
    %v916 = vmul.f32 %v850, %v850
    %v917 = vmul.f32 %v853, %v853
    %v918 = vmul.f32 %v858, %v858
    %v919 = vmul.f32 %v861, %v861
    %v920 = vmul.f32 %v866, %v866
    %v921 = vmul.f32 %v869, %v869
    %v922 = vmul.f32 %v874, %v874
    %v923 = vmul.f32 %v877, %v877
    %v924 = vmul.f32 %v882, %v882
    %v925 = vmul.f32 %v885, %v885
    %v926 = vmul.f32 %v890, %v890
    %v927 = vmul.f32 %v893, %v893
    %v928 = vadd.f32 %v912, %v913
    %v929 = vadd.f32 %v928, %v914
    %v930 = vadd.f32 %v929, %v915
    %v931 = vadd.f32 %v930, %v916
    %v932 = vadd.f32 %v931, %v917
    %v933 = vadd.f32 %v932, %v918
    %v934 = vadd.f32 %v933, %v919
    %v935 = vadd.f32 %v934, %v920
    %v936 = vadd.f32 %v935, %v921
    %v937 = vadd.f32 %v936, %v922
    %v938 = vadd.f32 %v937, %v923
    %v939 = vadd.f32 %v938, %v924
    %v940 = vadd.f32 %v939, %v925
    %v941 = vadd.f32 %v940, %v926
    %v942 = vadd.f32 %v941, %v927
    %v943 = vadd.f32 %v717, %v942
    %944 = vst [vmem:[#allocation2] sm:$0xff] %v911
    %945 = vst [vmem:[#allocation4] sm:$0xff] %v943
    // Predicated region
    $region10: #{tpu_custom_call.1} parent=1 // pred_check
      _
    $region11: #{tpu_custom_call.1} parent=1 // pred_check_branch
      %947 = sbr.rel (0) target = $region13
    $region12: #{tpu_custom_call.1} parent=1 // pred_region
      %s949 = ssub.s32 128, 128
      %950 = vsyncadd [#allocation3], %s949
      %s952 = sshll.u32 [#allocation2], 4
      %s953 = int_to_ptr.vmem [resolvable:$true] %s952
      %955 = dma.vmem_to_hbm [thread:$0]  %s953, 128, %s2, [#allocation3]
    $region13: #{tpu_custom_call.1} parent=1 // pred_fallthru
      _
    // Predicated region
    $region14: #{tpu_custom_call.1} parent=1 // pred_check
      _
    $region15: #{tpu_custom_call.1} parent=1 // pred_check_branch
      %957 = sbr.rel (0) target = $region17
    $region16: #{tpu_custom_call.1} parent=1 // pred_region
      %s959 = ssub.s32 128, 128
      %960 = vsyncadd [#allocation5], %s959
      %s962 = sshll.u32 [#allocation4], 4
      %s963 = int_to_ptr.vmem [resolvable:$true] %s962
      %965 = dma.vmem_to_hbm [thread:$0]  %s963, 128, %s3, [#allocation5]
    $region17: #{tpu_custom_call.1} parent=1 // pred_fallthru
      _
    // Predicated region
    $region18: #{tpu_custom_call.1} parent=1 // pred_check
      _
    $region19: #{tpu_custom_call.1} parent=1 // pred_check_branch
      %967 = sbr.rel (0) target = $region21
    $region20: #{tpu_custom_call.1} parent=1 // pred_region
      %968 = dma.done [#allocation3], 128
    $region21: #{tpu_custom_call.1} parent=1 // pred_fallthru
      _
    // Predicated region
    $region22: #{tpu_custom_call.1} parent=1 // pred_check
      _
    $region23: #{tpu_custom_call.1} parent=1 // pred_check_branch
      %970 = sbr.rel (0) target = $region25
    $region24: #{tpu_custom_call.1} parent=1 // pred_region
      %971 = dma.done [#allocation5], 128
    $region25: #{tpu_custom_call.1} parent=1 // pred_fallthru
      _
    %972 = vsyncpa [#allocation3], 1
    %973 = vsyncpa [#allocation5], 1

</llo_original>
